<compile_context>
chip_gen: v7x
topology: tpu7x:2x2x1
jax: 0.10.0
libtpu: 0.0.40
codegen_flags: <defaults>
</compile_context>

<pallas_src>
import jax
import jax.numpy as jnp
from jax.experimental import pallas as pl
from jax.experimental.pallas import tpu as pltpu

BN_EPS = 1e-5
_VMEM_CAP_BYTES = 48 * 2**20   # headroom under v7x's 64 MiB physical VMEM


def _make_decoder_kernel(depth: int, mm_dtype, exact_var: bool, sub_batch: int):
    """Kernel closed over depth, matmul dtype, variance formulation and the
    (static) per-group batch size."""
    use_mxu_stats = sub_batch >= 128   # offload column sums to the MXU at large B

    def kernel(x_ref, w_in_ref, w_h_ref, gb_ref, w_out_ref, out_ref):
        # Input projection (no bias) + ReLU.  Weights pre-transposed host-side
        # to (in_features, out_features): no in-kernel transpose, lane-dense N.
        h = jnp.dot(
            x_ref[...].astype(mm_dtype),
            w_in_ref[...],
            preferred_element_type=jnp.float32,
        )
        h = jnp.maximum(h, 0.0)

        # Hidden blocks: Linear -> BatchNorm1d (training-mode stats) -> ReLU.
        for i in range(depth):
            h = jnp.dot(
                h.astype(mm_dtype),
                w_h_ref[i],                       # static index into (depth,H,H)
                preferred_element_type=jnp.float32,
            )

            if use_mxu_stats:
                # MXU column sums: free filler between layer matmuls at large B.
                ones = jnp.full((1, sub_batch), 1.0 / sub_batch, jnp.float32)
                mean = jnp.dot(ones, h, preferred_element_type=jnp.float32)
                if exact_var:
                    d = h - mean
                    var = jnp.dot(ones, d * d, preferred_element_type=jnp.float32)
                else:
                    mean_sq = jnp.dot(ones, h * h, preferred_element_type=jnp.float32)
                    var = jnp.maximum(mean_sq - mean * mean, 0.0)
            else:
                mean = jnp.mean(h, axis=0, keepdims=True)            # (1, H)
                if exact_var:
                    # Two-pass (cancellation-safe) variance for the f32 path.
                    d = h - mean
                    var = jnp.mean(d * d, axis=0, keepdims=True)
                else:
                    # One-pass clamped variance (bf16 fast path only).
                    mean_sq = jnp.mean(h * h, axis=0, keepdims=True)
                    var = jnp.maximum(mean_sq - mean * mean, 0.0)

            gamma = gb_ref[2 * i : 2 * i + 1, :]                     # (1, H)
            beta = gb_ref[2 * i + 1 : 2 * i + 2, :]                  # (1, H)

            # Fold BN affine into a single scale/shift (computed on (1,H)).
            scale = gamma * jax.lax.rsqrt(var + BN_EPS)              # EUP
            shift = beta - mean * scale
            h = jnp.maximum(h * scale + shift, 0.0)

        # Output projection (no bias), lane-dense padded output slab.
        out_ref[...] = jnp.dot(
            h.astype(mm_dtype),
            w_out_ref[...],
            preferred_element_type=jnp.float32,
        ).astype(out_ref.dtype)

    return kernel


def should_use_bf16(batch: int, num_units: int) -> bool:
    """Gate bf16 MXU inputs on shape, not TPU generation: bf16 packs 16 rows
    per sublane group, so only pay the cast when B fills the vregs."""
    del num_units
    return batch >= 16 and batch % 16 == 0


def pack_params(params, use_bf16: bool = False):
    """Host-side layout plumbing: transpose, stack, pad, (optionally) cast."""
    depth = len(params["hidden"])
    solution_dim, num_units = params["w_out"].shape
    s_pad = ((solution_dim + 127) // 128) * 128  # lane-dense output width

    mm_dtype = jnp.bfloat16 if use_bf16 else jnp.float32

    w_in_t = params["w_in"].T                                        # (L, H)
    w_h_t = jnp.stack([w.T for (w, _, _) in params["hidden"]])       # (depth, H, H)
    gb = jnp.stack(
        [v for (_, g, b) in params["hidden"] for v in (g, b)]
    )                                                                # (2*depth, H)
    w_out_t = (
        jnp.zeros((num_units, s_pad), jnp.float32)
        .at[:, :solution_dim]
        .set(params["w_out"].T)
    )                                                                # (H, s_pad)

    return {
        "w_in_t": w_in_t.astype(mm_dtype),
        "w_h_t": w_h_t.astype(mm_dtype),
        "gb": gb.astype(jnp.float32),
        "w_out_t": w_out_t.astype(mm_dtype),
        "depth": depth,
        "solution_dim": solution_dim,
        "s_pad": s_pad,
        "use_bf16": use_bf16,
    }


def _shared_spec(arr):
    """Whole-array block, same tile every grid step (weights stay resident)."""
    nd = arr.ndim
    return pl.BlockSpec(arr.shape, lambda g, _nd=nd: (0,) * _nd)


def decoder_forward(x, packed, slice_padding: bool = True):
    """Run the decoder.

    x: (B, latent) for a single forward pass, or (G, B, latent) for G fused
    independent forward passes (each sub-batch gets its own BN statistics),
    amortizing pallas_call overhead and (on v7x) using both TensorCores.
    """
    squeeze = x.ndim == 2
    if squeeze:
        x = x[None]
    g_dim, batch, latent = x.shape

    depth = packed["depth"]
    s_pad = packed["s_pad"]
    num_units = packed["w_in_t"].shape[1]
    use_bf16 = packed["use_bf16"]
    mm_dtype = jnp.bfloat16 if use_bf16 else jnp.float32

    weights = (packed["w_in_t"], packed["w_h_t"], packed["gb"], packed["w_out_t"])

    # VMEM budget: resident weights + double-buffered per-group x / out blocks.
    weight_bytes = sum(int(a.size) * a.dtype.itemsize for a in weights)
    block_bytes = batch * latent * x.dtype.itemsize + batch * s_pad * 4
    vmem_limit = int(
        min(_VMEM_CAP_BYTES, max(16 * 2**20, 2 * (weight_bytes + 2 * block_bytes)))
    )

    # Advisory cost hint for XLA's scheduler.
    flops_per_g = (
        2 * batch * num_units * latent
        + depth * (2 * batch * num_units * num_units + 6 * batch * num_units)
        + 2 * batch * num_units * s_pad
    )
    cost = pl.CostEstimate(
        flops=int(g_dim * flops_per_g),
        transcendentals=int(g_dim * depth * num_units),
        bytes_accessed=int(
            weight_bytes
            + g_dim * batch * latent * x.dtype.itemsize
            + g_dim * batch * s_pad * 4
        ),
    )

    kernel = _make_decoder_kernel(
        depth, mm_dtype, exact_var=not use_bf16, sub_batch=batch
    )

    out = pl.pallas_call(
        kernel,
        out_shape=jax.ShapeDtypeStruct((g_dim, batch, s_pad), jnp.float32),
        grid=(g_dim,),
        in_specs=[
            pl.BlockSpec((pl.Squeezed(), batch, latent), lambda g: (g, 0, 0)),
            *(_shared_spec(w) for w in weights),
        ],
        out_specs=pl.BlockSpec((pl.Squeezed(), batch, s_pad), lambda g: (g, 0, 0)),
        compiler_params=pltpu.CompilerParams(
            dimension_semantics=("parallel",),   # split G across v7x TCs
            vmem_limit_bytes=vmem_limit,
        ),
        cost_estimate=cost,
    )(x, *weights)

    if slice_padding:
        out = out[..., : packed["solution_dim"]]
    if squeeze:
        out = out[0]
    return out


def decoder_reference(x, params, use_bf16: bool = False):
    """Pure-JAX reference (PyTorch weight convention, training-mode BN)."""
    mm = jnp.bfloat16 if use_bf16 else jnp.float32

    def dot(a, w):  # w is PyTorch (out_features, in_features)
        return jnp.dot(a.astype(mm), w.T.astype(mm), preferred_element_type=jnp.float32)

    def fwd(xi):
        h = jnp.maximum(dot(xi, params["w_in"]), 0.0)
        for (w, g, b) in params["hidden"]:
            h = dot(h, w)
            mean = jnp.mean(h, axis=0, keepdims=True)
            var = jnp.mean((h - mean) ** 2, axis=0, keepdims=True)  # biased var
            h = (h - mean) * jax.lax.rsqrt(var + BN_EPS)
            h = h * g[None, :] + b[None, :]
            h = jnp.maximum(h, 0.0)
        return dot(h, params["w_out"])

    if x.ndim == 2:
        return fwd(x)
    return jnp.stack([fwd(x[i]) for i in range(x.shape[0])])


def init_params(key, latent_dim, hidden_features, solution_dim):
    num_units = hidden_features[0]
    depth = len(hidden_features)
    keys = jax.random.split(key, depth + 2)

    def lin(k, out_f, in_f):
        bound = 1.0 / jnp.sqrt(in_f)
        return jax.random.uniform(
            k, (out_f, in_f), jnp.float32, minval=-bound, maxval=bound
        )

    return {
        "w_in": lin(keys[0], num_units, latent_dim),
        "hidden": [
            (
                lin(keys[1 + i], num_units, num_units),
                jnp.ones((num_units,), jnp.float32),   # BN gamma
                jnp.zeros((num_units,), jnp.float32),  # BN beta
            )
            for i in range(depth)
        ],
        "w_out": lin(keys[depth + 1], solution_dim, num_units),
    }


if __name__ == "__main__":
    latent_dim = 16
    hidden_features = [32, 32]   # num_units=32, depth=2
    solution_dim = 24

    key = jax.random.PRNGKey(0)
    k_x1, k_x2, k_p = jax.random.split(key, 3)
    params = init_params(k_p, latent_dim, hidden_features, solution_dim)

    # 1) Single tiny forward pass (original module usage): f32 exact path,
    #    two-pass variance -> tight tolerance vs. the reference.
    batch = 8
    x = jax.random.normal(k_x1, (batch, latent_dim), jnp.float32)
    packed_f32 = pack_params(params, use_bf16=False)
    out = jax.block_until_ready(decoder_forward(x, packed_f32))
    ref = decoder_reference(x, params, use_bf16=False)
    assert out.shape == (batch, solution_dim)
    assert jnp.allclose(out, ref, atol=1e-4, rtol=1e-4), "f32 mismatch vs reference"

    # 2) Fused-population path: G independent decoder forward passes in ONE
    #    pallas_call (grid=(G,), "parallel" -> both v7x TCs), bf16 MXU inputs
    #    gated on shape (B multiple of 16), f32 accumulation.
    g_dim, batch2 = 4, 16
    x_g = jax.random.normal(k_x2, (g_dim, batch2, latent_dim), jnp.float32)
    use_bf16 = should_use_bf16(batch2, hidden_features[0])
    packed_fast = pack_params(params, use_bf16=use_bf16)
    out_g = jax.block_until_ready(decoder_forward(x_g, packed_fast))
    ref_g = decoder_reference(x_g, params, use_bf16=use_bf16)
    assert out_g.shape == (g_dim, batch2, solution_dim)
    tol = 2e-2 if use_bf16 else 1e-4
    assert jnp.allclose(out_g, ref_g, atol=tol, rtol=tol), "fused-grid mismatch"

    print("KERNEL_OK")
</pallas_src>

<mosaic_0001>
module attributes {stable_mosaic.version = 11 : i64} {
  func.func @kernel(%arg0: i32, %arg1: memref<1x8x16xf32, #tpu.memory_space<vmem>>, %arg2: memref<16x32xf32, #tpu.memory_space<vmem>>, %arg3: memref<2x32x32xf32, #tpu.memory_space<vmem>>, %arg4: memref<4x32xf32, #tpu.memory_space<vmem>>, %arg5: memref<32x128xf32, #tpu.memory_space<vmem>>, %arg6: memref<1x8x128xf32, #tpu.memory_space<vmem>>) attributes {dimension_semantics = [#tpu.dimension_semantics<parallel>], iteration_bounds = array<i64: 1>, scalar_prefetch = 0 : i64, scratch_operands = 0 : i64, tpu.core_type = #tpu.core_type<tc>, window_params = [{transform_indices = @transform_0, window_bounds = array<i64: 1, 8, 16>}, {pipeline_mode = #tpu.pipeline_mode<synchronous>, transform_indices = @transform_1, window_bounds = array<i64: 16, 32>}, {pipeline_mode = #tpu.pipeline_mode<synchronous>, transform_indices = @transform_2, window_bounds = array<i64: 2, 32, 32>}, {pipeline_mode = #tpu.pipeline_mode<synchronous>, transform_indices = @transform_3, window_bounds = array<i64: 4, 32>}, {pipeline_mode = #tpu.pipeline_mode<synchronous>, transform_indices = @transform_4, window_bounds = array<i64: 32, 128>}, {transform_indices = @transform_5, window_bounds = array<i64: 1, 8, 128>}]} {
    %c0 = arith.constant 0 : index
    %c0_0 = arith.constant 0 : index
    %c0_1 = arith.constant 0 : index
    %0 = vector.load %arg1[%c0, %c0_0, %c0_1] : memref<1x8x16xf32, #tpu.memory_space<vmem>>, vector<1x8x16xf32>
    %1 = vector.shape_cast %0 : vector<1x8x16xf32> to vector<8x16xf32>
    %c0_2 = arith.constant 0 : index
    %c0_3 = arith.constant 0 : index
    %2 = vector.load %arg2[%c0_2, %c0_3] : memref<16x32xf32, #tpu.memory_space<vmem>>, vector<16x32xf32>
    %cst = arith.constant dense<0.000000e+00> : vector<8x32xf32>
    %3 = tpu.matmul %1, %2, %cst {dimension_numbers = #tpu.dot_dimension_numbers<[1], [0], [0], [1], [0, 0, 1, 1], [], []>} : vector<8x16xf32>, vector<16x32xf32>, vector<8x32xf32> -> vector<8x32xf32>
    %cst_4 = arith.constant 0.000000e+00 : f32
    %4 = vector.broadcast %cst_4 : f32 to vector<8x32xf32>
    %5 = arith.maximumf %3, %4 : vector<8x32xf32>
    %c0_5 = arith.constant 0 : index
    %c0_6 = arith.constant 0 : index
    %c0_7 = arith.constant 0 : index
    %6 = vector.load %arg3[%c0_5, %c0_6, %c0_7] : memref<2x32x32xf32, #tpu.memory_space<vmem>>, vector<1x32x32xf32>
    %7 = vector.shape_cast %6 : vector<1x32x32xf32> to vector<32x32xf32>
    %cst_8 = arith.constant dense<0.000000e+00> : vector<8x32xf32>
    %8 = tpu.matmul %5, %7, %cst_8 {dimension_numbers = #tpu.dot_dimension_numbers<[1], [0], [0], [1], [0, 0, 1, 1], [], []>} : vector<8x32xf32>, vector<32x32xf32>, vector<8x32xf32> -> vector<8x32xf32>
    %cst_9 = arith.constant dense<0.000000e+00> : vector<32xf32>
    %9 = vector.multi_reduction <add>, %8, %cst_9 [0] : vector<8x32xf32> to vector<32xf32>
    %10 = vector.shape_cast %9 : vector<32xf32> to vector<1x32xf32>
    %cst_10 = arith.constant 8.000000e+00 : f32
    %11 = vector.broadcast %cst_10 : f32 to vector<1x32xf32>
    %12 = arith.divf %10, %11 : vector<1x32xf32>
    %13 = vector.broadcast %12 : vector<1x32xf32> to vector<8x32xf32>
    %14 = arith.subf %8, %13 : vector<8x32xf32>
    %15 = arith.mulf %14, %14 : vector<8x32xf32>
    %cst_11 = arith.constant dense<0.000000e+00> : vector<32xf32>
    %16 = vector.multi_reduction <add>, %15, %cst_11 [0] : vector<8x32xf32> to vector<32xf32>
    %17 = vector.shape_cast %16 : vector<32xf32> to vector<1x32xf32>
    %cst_12 = arith.constant 8.000000e+00 : f32
    %18 = vector.broadcast %cst_12 : f32 to vector<1x32xf32>
    %19 = arith.divf %17, %18 : vector<1x32xf32>
    %c0_13 = arith.constant 0 : index
    %c0_14 = arith.constant 0 : index
    %20 = vector.load %arg4[%c0_13, %c0_14] : memref<4x32xf32, #tpu.memory_space<vmem>>, vector<1x32xf32>
    %c1 = arith.constant 1 : index
    %c0_15 = arith.constant 0 : index
    %21 = vector.load %arg4[%c1, %c0_15] : memref<4x32xf32, #tpu.memory_space<vmem>>, vector<1x32xf32>
    %cst_16 = arith.constant 9.99999974E-6 : f32
    %22 = vector.broadcast %cst_16 : f32 to vector<1x32xf32>
    %23 = arith.addf %19, %22 : vector<1x32xf32>
    %24 = math.rsqrt %23 : vector<1x32xf32>
    %25 = arith.mulf %20, %24 : vector<1x32xf32>
    %26 = arith.mulf %12, %25 : vector<1x32xf32>
    %27 = arith.subf %21, %26 : vector<1x32xf32>
    %28 = vector.broadcast %25 : vector<1x32xf32> to vector<8x32xf32>
    %29 = arith.mulf %8, %28 : vector<8x32xf32>
    %30 = vector.broadcast %27 : vector<1x32xf32> to vector<8x32xf32>
    %31 = arith.addf %29, %30 : vector<8x32xf32>
    %cst_17 = arith.constant 0.000000e+00 : f32
    %32 = vector.broadcast %cst_17 : f32 to vector<8x32xf32>
    %33 = arith.maximumf %31, %32 : vector<8x32xf32>
    %c1_18 = arith.constant 1 : index
    %c0_19 = arith.constant 0 : index
    %c0_20 = arith.constant 0 : index
    %34 = vector.load %arg3[%c1_18, %c0_19, %c0_20] : memref<2x32x32xf32, #tpu.memory_space<vmem>>, vector<1x32x32xf32>
    %35 = vector.shape_cast %34 : vector<1x32x32xf32> to vector<32x32xf32>
    %cst_21 = arith.constant dense<0.000000e+00> : vector<8x32xf32>
    %36 = tpu.matmul %33, %35, %cst_21 {dimension_numbers = #tpu.dot_dimension_numbers<[1], [0], [0], [1], [0, 0, 1, 1], [], []>} : vector<8x32xf32>, vector<32x32xf32>, vector<8x32xf32> -> vector<8x32xf32>
    %cst_22 = arith.constant dense<0.000000e+00> : vector<32xf32>
    %37 = vector.multi_reduction <add>, %36, %cst_22 [0] : vector<8x32xf32> to vector<32xf32>
    %38 = vector.shape_cast %37 : vector<32xf32> to vector<1x32xf32>
    %cst_23 = arith.constant 8.000000e+00 : f32
    %39 = vector.broadcast %cst_23 : f32 to vector<1x32xf32>
    %40 = arith.divf %38, %39 : vector<1x32xf32>
    %41 = vector.broadcast %40 : vector<1x32xf32> to vector<8x32xf32>
    %42 = arith.subf %36, %41 : vector<8x32xf32>
    %43 = arith.mulf %42, %42 : vector<8x32xf32>
    %cst_24 = arith.constant dense<0.000000e+00> : vector<32xf32>
    %44 = vector.multi_reduction <add>, %43, %cst_24 [0] : vector<8x32xf32> to vector<32xf32>
    %45 = vector.shape_cast %44 : vector<32xf32> to vector<1x32xf32>
    %cst_25 = arith.constant 8.000000e+00 : f32
    %46 = vector.broadcast %cst_25 : f32 to vector<1x32xf32>
    %47 = arith.divf %45, %46 : vector<1x32xf32>
    %c2 = arith.constant 2 : index
    %c0_26 = arith.constant 0 : index
    %48 = vector.load %arg4[%c2, %c0_26] : memref<4x32xf32, #tpu.memory_space<vmem>>, vector<1x32xf32>
    %c3 = arith.constant 3 : index
    %c0_27 = arith.constant 0 : index
    %49 = vector.load %arg4[%c3, %c0_27] : memref<4x32xf32, #tpu.memory_space<vmem>>, vector<1x32xf32>
    %cst_28 = arith.constant 9.99999974E-6 : f32
    %50 = vector.broadcast %cst_28 : f32 to vector<1x32xf32>
    %51 = arith.addf %47, %50 : vector<1x32xf32>
    %52 = math.rsqrt %51 : vector<1x32xf32>
    %53 = arith.mulf %48, %52 : vector<1x32xf32>
    %54 = arith.mulf %40, %53 : vector<1x32xf32>
    %55 = arith.subf %49, %54 : vector<1x32xf32>
    %56 = vector.broadcast %53 : vector<1x32xf32> to vector<8x32xf32>
    %57 = arith.mulf %36, %56 : vector<8x32xf32>
    %58 = vector.broadcast %55 : vector<1x32xf32> to vector<8x32xf32>
    %59 = arith.addf %57, %58 : vector<8x32xf32>
    %cst_29 = arith.constant 0.000000e+00 : f32
    %60 = vector.broadcast %cst_29 : f32 to vector<8x32xf32>
    %61 = arith.maximumf %59, %60 : vector<8x32xf32>
    %c0_30 = arith.constant 0 : index
    %c0_31 = arith.constant 0 : index
    %62 = vector.load %arg5[%c0_30, %c0_31] : memref<32x128xf32, #tpu.memory_space<vmem>>, vector<32x128xf32>
    %cst_32 = arith.constant dense<0.000000e+00> : vector<8x128xf32>
    %63 = tpu.matmul %61, %62, %cst_32 {dimension_numbers = #tpu.dot_dimension_numbers<[1], [0], [0], [1], [0, 0, 1, 1], [], []>} : vector<8x32xf32>, vector<32x128xf32>, vector<8x128xf32> -> vector<8x128xf32>
    %c0_33 = arith.constant 0 : index
    %c0_34 = arith.constant 0 : index
    %c0_35 = arith.constant 0 : index
    %64 = vector.load %arg6[%c0_33, %c0_34, %c0_35] : memref<1x8x128xf32, #tpu.memory_space<vmem>>, vector<1x8x128xf32>
    %65 = vector.shape_cast %64 : vector<1x8x128xf32> to vector<8x128xf32>
    %66 = vector.shape_cast %63 : vector<8x128xf32> to vector<1x8x128xf32>
    tpu.vector_store %arg6[%c0_33, %c0_34, %c0_35], %66 {strides = array<i32>} : memref<1x8x128xf32, #tpu.memory_space<vmem>>, vector<1x8x128xf32>,
    return
  }
  func.func @transform_0(%arg0: i32) -> (i32, i32, i32) {
    %c0_i32 = arith.constant 0 : i32
    %c0_i32_0 = arith.constant 0 : i32
    %c0_i32_1 = arith.constant 0 : i32
    return %arg0, %c0_i32, %c0_i32_0 : i32, i32, i32
  }
  func.func @transform_1(%arg0: i32) -> (i32, i32) {
    %c0_i32 = arith.constant 0 : i32
    %c0_i32_0 = arith.constant 0 : i32
    %c0_i32_1 = arith.constant 0 : i32
    return %c0_i32, %c0_i32_0 : i32, i32
  }
  func.func @transform_2(%arg0: i32) -> (i32, i32, i32) {
    %c0_i32 = arith.constant 0 : i32
    %c0_i32_0 = arith.constant 0 : i32
    %c0_i32_1 = arith.constant 0 : i32
    %c0_i32_2 = arith.constant 0 : i32
    return %c0_i32, %c0_i32_0, %c0_i32_1 : i32, i32, i32
  }
  func.func @transform_3(%arg0: i32) -> (i32, i32) {
    %c0_i32 = arith.constant 0 : i32
    %c0_i32_0 = arith.constant 0 : i32
    %c0_i32_1 = arith.constant 0 : i32
    return %c0_i32, %c0_i32_0 : i32, i32
  }
  func.func @transform_4(%arg0: i32) -> (i32, i32) {
    %c0_i32 = arith.constant 0 : i32
    %c0_i32_0 = arith.constant 0 : i32
    %c0_i32_1 = arith.constant 0 : i32
    return %c0_i32, %c0_i32_0 : i32, i32
  }
  func.func @transform_5(%arg0: i32) -> (i32, i32, i32) {
    %c0_i32 = arith.constant 0 : i32
    %c0_i32_0 = arith.constant 0 : i32
    %c0_i32_1 = arith.constant 0 : i32
    return %arg0, %c0_i32, %c0_i32_0 : i32, i32, i32
  }
}

</mosaic_0001>

<llo_original>
// kernel: tpu_custom_call.1
$region0: #{tpu_custom_call.1}
  #allocation0 [shape = 'u32[]', space=smem, size = 0x4, offset = 0x4, fixed_abs, tag = 'smem constant byte address 0x4 - core index']
  #allocation1 [shape = 'u32[144,128]{1,0:T(1,128)}', space=vmem, size = 0x12000, scoped, tag = 'internal scratch']
  %s0 = inlined_call_operand.hbm [shape: f32[1,8,16], index: 0, kind: input, shape index: {}]
  %s1 = inlined_call_operand.hbm [shape: f32[16,32], index: 1, kind: input, shape index: {}]
  %s2 = inlined_call_operand.hbm [shape: f32[2,32,32], index: 2, kind: input, shape index: {}]
  %s3 = inlined_call_operand.vmem [shape: f32[4,32], index: 3, kind: input, shape index: {}]
  %s4 = inlined_call_operand.hbm [shape: f32[32,128], index: 4, kind: input, shape index: {}]
  %s5 = inlined_call_operand.hbm [shape: f32[1,8,128], index: 5, kind: output, shape index: {}]
  %s6 = sld [smem:[#allocation0]]
  $region46: #{tpu_custom_call.1} parent=0
    _
  %s8 = ssub.s32 1, %s6
  %s9 = scalar_select 0, %s8, %s6
  $region1: #{tpu_custom_call.1} parent=0
    #allocation2 [shape = 'u8[4096]{0}', space=vmem, size = 0x1000, scoped, tag = 'input window, operand 0, single buffered']
    #allocation3 [shape = 's32[1]{0}', space=sflag, size = 0x4, scoped, tag = 'scoped memory for tpu_custom_call.1']
    #allocation4 [shape = 's32[1]{0}', space=sflag, size = 0x4, scoped, tag = 'scoped memory for tpu_custom_call.1']
    #allocation5 [shape = 'u8[8192]{0}', space=vmem, size = 0x2000, scoped, tag = 'input window, operand 1, single buffered']
    #allocation6 [shape = 's32[1]{0}', space=sflag, size = 0x4, scoped, tag = 'scoped memory for tpu_custom_call.1']
    #allocation7 [shape = 'u8[32768]{0}', space=vmem, size = 0x8000, scoped, tag = 'input window, operand 2, single buffered']
    #allocation8 [shape = 'u8[16384]{0}', space=vmem, size = 0x4000, scoped, tag = 'input window, operand 4, single buffered']
    #allocation9 [shape = 's32[1]{0}', space=sflag, size = 0x4, scoped, tag = 'scoped memory for tpu_custom_call.1']
    #allocation10 [shape = 'u8[4096]{0}', space=vmem, size = 0x1000, scoped, tag = 'output window, operand 0, single buffered']
    %10 = vsyncpa [#allocation3], 0
    %11 = vsyncpa [#allocation6], 0
    %12 = vsyncpa [#allocation9], 0
    %13 = vsyncpa [#allocation4], 0
    // Predicated region
    $region2: #{tpu_custom_call.1} parent=1 // pred_check
      _
    $region3: #{tpu_custom_call.1} parent=1 // pred_check_branch
      %15 = sbr.rel (0) target = $region5
    $region4: #{tpu_custom_call.1} parent=1 // pred_region
      %s17 = ssub.s32 128, 128
      %18 = vsyncadd [#allocation3], %s17
      %s20 = sshll.u32 [#allocation2], 4
      %s21 = int_to_ptr.vmem [resolvable:$true] %s20
      %23 = dma.hbm_to_vmem [thread:$0]  %s0, 128, %s21, [#allocation3]
    $region5: #{tpu_custom_call.1} parent=1 // pred_fallthru
      _
    // Predicated region
    $region6: #{tpu_custom_call.1} parent=1 // pred_check
      _
    $region7: #{tpu_custom_call.1} parent=1 // pred_check_branch
      %25 = sbr.rel (0) target = $region9
    $region8: #{tpu_custom_call.1} parent=1 // pred_region
      %s27 = ssub.s32 256, 256
      %28 = vsyncadd [#allocation6], %s27
      %s29 = sshll.u32 [#allocation5], 4
      %s30 = int_to_ptr.vmem [resolvable:$true] %s29
      %35 = dma.hbm_to_vmem [thread:$0]  %s1, 256, %s30, [#allocation6], 128, 128, 8
    $region9: #{tpu_custom_call.1} parent=1 // pred_fallthru
      _
    // Predicated region
    $region10: #{tpu_custom_call.1} parent=1 // pred_check
      _
    $region11: #{tpu_custom_call.1} parent=1 // pred_check_branch
      %37 = sbr.rel (0) target = $region13
    $region12: #{tpu_custom_call.1} parent=1 // pred_region
      %s39 = ssub.s32 1024, 1024
      %40 = vsyncadd [#allocation6], %s39
      %s41 = sshll.u32 [#allocation7], 4
      %s42 = int_to_ptr.vmem [resolvable:$true] %s41
      %47 = dma.hbm_to_vmem [thread:$0]  %s2, 1024, %s42, [#allocation6], 128, 128, 8
    $region13: #{tpu_custom_call.1} parent=1 // pred_fallthru
      _
    // Predicated region
    $region14: #{tpu_custom_call.1} parent=1 // pred_check
      _
    $region15: #{tpu_custom_call.1} parent=1 // pred_check_branch
      %49 = sbr.rel (0) target = $region17
    $region16: #{tpu_custom_call.1} parent=1 // pred_region
      _
    $region17: #{tpu_custom_call.1} parent=1 // pred_fallthru
      _
    // Predicated region
    $region18: #{tpu_custom_call.1} parent=1 // pred_check
      _
    $region19: #{tpu_custom_call.1} parent=1 // pred_check_branch
      %51 = sbr.rel (0) target = $region21
    $region20: #{tpu_custom_call.1} parent=1 // pred_region
      %s53 = ssub.s32 512, 512
      %54 = vsyncadd [#allocation9], %s53
      %s55 = sshll.u32 [#allocation8], 4
      %s56 = int_to_ptr.vmem [resolvable:$true] %s55
      %61 = dma.hbm_to_vmem [thread:$0]  %s4, 512, %s56, [#allocation9], 128, 128, 8
    $region21: #{tpu_custom_call.1} parent=1 // pred_fallthru
      _
    // Predicated region
    $region22: #{tpu_custom_call.1} parent=1 // pred_check
      _
    $region23: #{tpu_custom_call.1} parent=1 // pred_check_branch
      %63 = sbr.rel (0) target = $region25
    $region24: #{tpu_custom_call.1} parent=1 // pred_region
      %64 = dma.done [#allocation3], 128
    $region25: #{tpu_custom_call.1} parent=1 // pred_fallthru
      _
    // Predicated region
    $region26: #{tpu_custom_call.1} parent=1 // pred_check
      _
    $region27: #{tpu_custom_call.1} parent=1 // pred_check_branch
      %66 = sbr.rel (0) target = $region29
    $region28: #{tpu_custom_call.1} parent=1 // pred_region
      %67 = dma.done [#allocation6], 256
    $region29: #{tpu_custom_call.1} parent=1 // pred_fallthru
      _
    // Predicated region
    $region30: #{tpu_custom_call.1} parent=1 // pred_check
      _
    $region31: #{tpu_custom_call.1} parent=1 // pred_check_branch
      %69 = sbr.rel (0) target = $region33
    $region32: #{tpu_custom_call.1} parent=1 // pred_region
      %70 = dma.done [#allocation6], 1024
    $region33: #{tpu_custom_call.1} parent=1 // pred_fallthru
      _
    // Predicated region
    $region34: #{tpu_custom_call.1} parent=1 // pred_check
      _
    $region35: #{tpu_custom_call.1} parent=1 // pred_check_branch
      %72 = sbr.rel (0) target = $region37
    $region36: #{tpu_custom_call.1} parent=1 // pred_region
      %73 = dma.done [#allocation9], 512
    $region37: #{tpu_custom_call.1} parent=1 // pred_fallthru
      _
    %v74 = vld [vmem:[#allocation2] sm:$0xff]
    %v75 = vld [vmem:[#allocation5] sm:$0xff]
    %v76 = vld [vmem:[#allocation5 + $0x8] sm:$0xff]
    %vm77 = vcmask 130048
    %v79 = vsel %vm77, %v74, 0
    %81 = vmatprep.subr.mxu0 0.0
    %82 = vmatpush1.msra.mxu0 %v75
    %83 = vmatprep.subr.mxu0 0.0
    %84 = vmatpush1.msra.mxu0 %v76
    %85 = vmatprep.subr.mxu0 0.0
    %86 = vmatpush1.msra.mxu0 0.0
    %87 = vmatprep.subr.mxu0 0.0
    %88 = vmatpush1.msra.mxu0 0.0
    %89 = vmatprep.subr.mxu0 0.0
    %90 = vmatpush1.msra.mxu0 0.0
    %91 = vmatprep.subr.mxu0 0.0
    %92 = vmatpush1.msra.mxu0 0.0
    %93 = vmatprep.subr.mxu0 0.0
    %94 = vmatpush1.msra.mxu0 0.0
    %95 = vmatprep.subr.mxu0 0.0
    %96 = vmatpush1.msra.mxu0 0.0
    %97 = vmatprep.subr.mxu0 0.0
    %98 = vmatpush1.msra.mxu0 0.0
    %99 = vmatprep.subr.mxu0 0.0
    %100 = vmatpush1.msra.mxu0 0.0
    %101 = vmatprep.subr.mxu0 0.0
    %102 = vmatpush1.msra.mxu0 0.0
    %103 = vmatprep.subr.mxu0 0.0
    %104 = vmatpush1.msra.mxu0 0.0
    %105 = vmatprep.subr.mxu0 0.0
    %106 = vmatpush1.msra.mxu0 0.0
    %107 = vmatprep.subr.mxu0 0.0
    %108 = vmatpush1.msra.mxu0 0.0
    %109 = vmatprep.subr.mxu0 0.0
    %110 = vmatpush1.msra.mxu0 0.0
    %111 = vmatprep.subr.mxu0 0.0
    %112 = vmatpush1.msra.mxu0 0.0
    %113 = vmatprep.subr.mxu0 0.0
    %114 = vmatpush1.msra.mxu0 0.0
    %115 = vmatprep.subr.mxu0 0.0
    %116 = vmatpush1.msra.mxu0 0.0
    %117 = vmatprep.subr.mxu0 0.0
    %118 = vmatpush1.msra.mxu0 0.0
    %119 = vmatprep.subr.mxu0 0.0
    %120 = vmatpush1.msra.mxu0 0.0
    %121 = vmatprep.subr.mxu0 0.0
    %122 = vmatpush1.msra.mxu0 0.0
    %123 = vmatprep.subr.mxu0 0.0
    %124 = vmatpush1.msra.mxu0 0.0
    %125 = vmatprep.subr.mxu0 0.0
    %126 = vmatpush1.msra.mxu0 0.0
    %127 = vmatprep.subr.mxu0 0.0
    %128 = vmatpush1.msra.mxu0 0.0
    %129 = vmatprep.subr.mxu0 0.0
    %130 = vmatpush1.msra.mxu0 0.0
    %131 = vmatprep.subr.mxu0 0.0
    %132 = vmatpush1.msra.mxu0 0.0
    %133 = vmatprep.subr.mxu0 0.0
    %134 = vmatpush1.msra.mxu0 0.0
    %135 = vmatprep.subr.mxu0 0.0
    %136 = vmatpush1.msra.mxu0 0.0
    %137 = vmatprep.subr.mxu0 0.0
    %138 = vmatpush1.msra.mxu0 0.0
    %139 = vmatprep.subr.mxu0 0.0
    %140 = vmatpush1.msra.mxu0 0.0
    %141 = vmatprep.subr.mxu0 0.0
    %142 = vmatpush1.msra.mxu0 0.0
    %143 = vmatprep.subr.mxu0 0.0
    %144 = vmatpush1.msra.mxu0 0.0
    %145 = vmatprep.mubr.f32.mxu0 0.0
    %146 = vmatmul.mubr.f32.gmra.mrb[0].mxu0 %v79
    %v147 = vpop.f32.mrb[0].mxu0
    %v148 = vadd.f32 0.0, %v147
    %v149 = vpop.f32.mrb[0].mxu0
    %150 = vdwg.mxu0
    %v151 = vmax.f32 %v148, 0.0
    %v152 = vld [vmem:[#allocation7] sm:$0xff]
    %v153 = vld [vmem:[#allocation7 + $0x8] sm:$0xff]
    %v154 = vld [vmem:[#allocation7 + $0x10] sm:$0xff]
    %v155 = vld [vmem:[#allocation7 + $0x18] sm:$0xff]
    %vm156 = vcmask 261120
    %v158 = vsel %vm156, %v151, 0
    %160 = vmatprep.subr.mxu0 0.0
    %161 = vmatpush1.msra.mxu0 %v152
    %162 = vmatprep.subr.mxu0 0.0
    %163 = vmatpush1.msra.mxu0 %v153
    %164 = vmatprep.subr.mxu0 0.0
    %165 = vmatpush1.msra.mxu0 %v154
    %166 = vmatprep.subr.mxu0 0.0
    %167 = vmatpush1.msra.mxu0 %v155
    %168 = vmatprep.subr.mxu0 0.0
    %169 = vmatpush1.msra.mxu0 0.0
    %170 = vmatprep.subr.mxu0 0.0
    %171 = vmatpush1.msra.mxu0 0.0
    %172 = vmatprep.subr.mxu0 0.0
    %173 = vmatpush1.msra.mxu0 0.0
    %174 = vmatprep.subr.mxu0 0.0
    %175 = vmatpush1.msra.mxu0 0.0
    %176 = vmatprep.subr.mxu0 0.0
    %177 = vmatpush1.msra.mxu0 0.0
    %178 = vmatprep.subr.mxu0 0.0
    %179 = vmatpush1.msra.mxu0 0.0
    %180 = vmatprep.subr.mxu0 0.0
    %181 = vmatpush1.msra.mxu0 0.0
    %182 = vmatprep.subr.mxu0 0.0
    %183 = vmatpush1.msra.mxu0 0.0
    %184 = vmatprep.subr.mxu0 0.0
    %185 = vmatpush1.msra.mxu0 0.0
    %186 = vmatprep.subr.mxu0 0.0
    %187 = vmatpush1.msra.mxu0 0.0
    %188 = vmatprep.subr.mxu0 0.0
    %189 = vmatpush1.msra.mxu0 0.0
    %190 = vmatprep.subr.mxu0 0.0
    %191 = vmatpush1.msra.mxu0 0.0
    %192 = vmatprep.subr.mxu0 0.0
    %193 = vmatpush1.msra.mxu0 0.0
    %194 = vmatprep.subr.mxu0 0.0
    %195 = vmatpush1.msra.mxu0 0.0
    %196 = vmatprep.subr.mxu0 0.0
    %197 = vmatpush1.msra.mxu0 0.0
    %198 = vmatprep.subr.mxu0 0.0
    %199 = vmatpush1.msra.mxu0 0.0
    %200 = vmatprep.subr.mxu0 0.0
    %201 = vmatpush1.msra.mxu0 0.0
    %202 = vmatprep.subr.mxu0 0.0
    %203 = vmatpush1.msra.mxu0 0.0
    %204 = vmatprep.subr.mxu0 0.0
    %205 = vmatpush1.msra.mxu0 0.0
    %206 = vmatprep.subr.mxu0 0.0
    %207 = vmatpush1.msra.mxu0 0.0
    %208 = vmatprep.subr.mxu0 0.0
    %209 = vmatpush1.msra.mxu0 0.0
    %210 = vmatprep.subr.mxu0 0.0
    %211 = vmatpush1.msra.mxu0 0.0
    %212 = vmatprep.subr.mxu0 0.0
    %213 = vmatpush1.msra.mxu0 0.0
    %214 = vmatprep.subr.mxu0 0.0
    %215 = vmatpush1.msra.mxu0 0.0
    %216 = vmatprep.subr.mxu0 0.0
    %217 = vmatpush1.msra.mxu0 0.0
    %218 = vmatprep.subr.mxu0 0.0
    %219 = vmatpush1.msra.mxu0 0.0
    %220 = vmatprep.subr.mxu0 0.0
    %221 = vmatpush1.msra.mxu0 0.0
    %222 = vmatprep.subr.mxu0 0.0
    %223 = vmatpush1.msra.mxu0 0.0
    %224 = vmatprep.mubr.f32.mxu0 0.0
    %225 = vmatmul.mubr.f32.gmra.mrb[0].mxu0 %v158
    %v226 = vpop.f32.mrb[0].mxu0
    %v227 = vadd.f32 0.0, %v226
    %v228 = vpop.f32.mrb[0].mxu0
    %229 = vdwg.mxu0
    %v230 = vsel %vm156, %v227, 0.0
    %v231 = vrot.slane %v230, 4
    %v232 = vadd.f32 %v230, %v231
    %v233 = vrot.slane %v232, 2
    %v234 = vadd.f32 %v232, %v233
    %v235 = vrot.slane %v234, 1
    %v236 = vadd.f32 %v234, %v235
    %v237 = vrcp.pop 8.0
    %v238 = vmul.f32 %v236, %v237
    %v239 = vsub.f32 %v227, %v238
    %v240 = vmul.f32 %v239, %v239
    %v241 = vsel %vm156, %v240, 0.0
    %v242 = vrot.slane %v241, 4
    %v243 = vadd.f32 %v241, %v242
    %v244 = vrot.slane %v243, 2
    %v245 = vadd.f32 %v243, %v244
    %v246 = vrot.slane %v245, 1
    %v247 = vadd.f32 %v245, %v246
    %v248 = vmul.f32 %v247, %v237
    %v249 = vld [vmem:[%s3] sm:$0x1]
    %v250 = vld [vmem:[%s3 + $0x1] sm:$0x1]
    %v251 = vadd.f32 %v248, 1e-05
    %v252 = vrsqrt.pop %v251
    %v253 = vmul.f32 %v249, %v252
    %v254 = vmul.f32 %v238, %v253
    %v255 = vsub.f32 %v250, %v254
    %v256 = vlaneseq
    %v257 = vshrl.u32 %v256, 7
    %v258 = vsub.s32 0, %v257
    %v259 = vrot.slane %v253, %v258
    %v260 = vmul.f32 %v227, %v259
    %v261 = vlaneseq
    %v262 = vshrl.u32 %v261, 7
    %v263 = vsub.s32 0, %v262
    %v264 = vrot.slane %v255, %v263
    %v265 = vadd.f32 %v260, %v264
    %v266 = vmax.f32 %v265, 0.0
    %s267 = scalar_lea.vmem [#allocation7], 32
    %v268 = vld [vmem:[%s267] sm:$0xff]
    %v269 = vld [vmem:[%s267 + $0x8] sm:$0xff]
    %v270 = vld [vmem:[%s267 + $0x10] sm:$0xff]
    %v271 = vld [vmem:[%s267 + $0x18] sm:$0xff]
    %v273 = vsel %vm156, %v266, 0
    %275 = vmatprep.subr.mxu0 0.0
    %276 = vmatpush1.msra.mxu0 %v268
    %277 = vmatprep.subr.mxu0 0.0
    %278 = vmatpush1.msra.mxu0 %v269
    %279 = vmatprep.subr.mxu0 0.0
    %280 = vmatpush1.msra.mxu0 %v270
    %281 = vmatprep.subr.mxu0 0.0
    %282 = vmatpush1.msra.mxu0 %v271
    %283 = vmatprep.subr.mxu0 0.0
    %284 = vmatpush1.msra.mxu0 0.0
    %285 = vmatprep.subr.mxu0 0.0
    %286 = vmatpush1.msra.mxu0 0.0
    %287 = vmatprep.subr.mxu0 0.0
    %288 = vmatpush1.msra.mxu0 0.0
    %289 = vmatprep.subr.mxu0 0.0
    %290 = vmatpush1.msra.mxu0 0.0
    %291 = vmatprep.subr.mxu0 0.0
    %292 = vmatpush1.msra.mxu0 0.0
    %293 = vmatprep.subr.mxu0 0.0
    %294 = vmatpush1.msra.mxu0 0.0
    %295 = vmatprep.subr.mxu0 0.0
    %296 = vmatpush1.msra.mxu0 0.0
    %297 = vmatprep.subr.mxu0 0.0
    %298 = vmatpush1.msra.mxu0 0.0
    %299 = vmatprep.subr.mxu0 0.0
    %300 = vmatpush1.msra.mxu0 0.0
    %301 = vmatprep.subr.mxu0 0.0
    %302 = vmatpush1.msra.mxu0 0.0
    %303 = vmatprep.subr.mxu0 0.0
    %304 = vmatpush1.msra.mxu0 0.0
    %305 = vmatprep.subr.mxu0 0.0
    %306 = vmatpush1.msra.mxu0 0.0
    %307 = vmatprep.subr.mxu0 0.0
    %308 = vmatpush1.msra.mxu0 0.0
    %309 = vmatprep.subr.mxu0 0.0
    %310 = vmatpush1.msra.mxu0 0.0
    %311 = vmatprep.subr.mxu0 0.0
    %312 = vmatpush1.msra.mxu0 0.0
    %313 = vmatprep.subr.mxu0 0.0
    %314 = vmatpush1.msra.mxu0 0.0
    %315 = vmatprep.subr.mxu0 0.0
    %316 = vmatpush1.msra.mxu0 0.0
    %317 = vmatprep.subr.mxu0 0.0
    %318 = vmatpush1.msra.mxu0 0.0
    %319 = vmatprep.subr.mxu0 0.0
    %320 = vmatpush1.msra.mxu0 0.0
    %321 = vmatprep.subr.mxu0 0.0
    %322 = vmatpush1.msra.mxu0 0.0
    %323 = vmatprep.subr.mxu0 0.0
    %324 = vmatpush1.msra.mxu0 0.0
    %325 = vmatprep.subr.mxu0 0.0
    %326 = vmatpush1.msra.mxu0 0.0
    %327 = vmatprep.subr.mxu0 0.0
    %328 = vmatpush1.msra.mxu0 0.0
    %329 = vmatprep.subr.mxu0 0.0
    %330 = vmatpush1.msra.mxu0 0.0
    %331 = vmatprep.subr.mxu0 0.0
    %332 = vmatpush1.msra.mxu0 0.0
    %333 = vmatprep.subr.mxu0 0.0
    %334 = vmatpush1.msra.mxu0 0.0
    %335 = vmatprep.subr.mxu0 0.0
    %336 = vmatpush1.msra.mxu0 0.0
    %337 = vmatprep.subr.mxu0 0.0
    %338 = vmatpush1.msra.mxu0 0.0
    %339 = vmatprep.mubr.f32.mxu0 0.0
    %340 = vmatmul.mubr.f32.gmra.mrb[0].mxu0 %v273
    %v341 = vpop.f32.mrb[0].mxu0
    %v342 = vadd.f32 0.0, %v341
    %v343 = vpop.f32.mrb[0].mxu0
    %344 = vdwg.mxu0
    %v345 = vsel %vm156, %v342, 0.0
    %v346 = vrot.slane %v345, 4
    %v347 = vadd.f32 %v345, %v346
    %v348 = vrot.slane %v347, 2
    %v349 = vadd.f32 %v347, %v348
    %v350 = vrot.slane %v349, 1
    %v351 = vadd.f32 %v349, %v350
    %v352 = vmul.f32 %v351, %v237
    %v353 = vsub.f32 %v342, %v352
    %v354 = vmul.f32 %v353, %v353
    %v355 = vsel %vm156, %v354, 0.0
    %v356 = vrot.slane %v355, 4
    %v357 = vadd.f32 %v355, %v356
    %v358 = vrot.slane %v357, 2
    %v359 = vadd.f32 %v357, %v358
    %v360 = vrot.slane %v359, 1
    %v361 = vadd.f32 %v359, %v360
    %v362 = vmul.f32 %v361, %v237
    %v363 = vld [vmem:[%s3 + $0x2] sm:$0x1]
    %v364 = vld [vmem:[%s3 + $0x3] sm:$0x1]
    %v365 = vadd.f32 %v362, 1e-05
    %v366 = vrsqrt.pop %v365
    %v367 = vmul.f32 %v363, %v366
    %v368 = vmul.f32 %v352, %v367
    %v369 = vsub.f32 %v364, %v368
    %v370 = vlaneseq
    %v371 = vshrl.u32 %v370, 7
    %v372 = vsub.s32 0, %v371
    %v373 = vrot.slane %v367, %v372
    %v374 = vmul.f32 %v342, %v373
    %v375 = vlaneseq
    %v376 = vshrl.u32 %v375, 7
    %v377 = vsub.s32 0, %v376
    %v378 = vrot.slane %v369, %v377
    %v379 = vadd.f32 %v374, %v378
    %v380 = vmax.f32 %v379, 0.0
    %v381 = vld [vmem:[#allocation8] sm:$0xff]
    %v382 = vld [vmem:[#allocation8 + $0x8] sm:$0xff]
    %v383 = vld [vmem:[#allocation8 + $0x10] sm:$0xff]
    %v384 = vld [vmem:[#allocation8 + $0x18] sm:$0xff]
    %v386 = vsel %vm156, %v380, 0
    %388 = vmatprep.subr.mxu0 0.0
    %389 = vmatpush1.msra.mxu0 %v381
    %390 = vmatprep.subr.mxu0 0.0
    %391 = vmatpush1.msra.mxu0 %v382
    %392 = vmatprep.subr.mxu0 0.0
    %393 = vmatpush1.msra.mxu0 %v383
    %394 = vmatprep.subr.mxu0 0.0
    %395 = vmatpush1.msra.mxu0 %v384
    %396 = vmatprep.subr.mxu0 0.0
    %397 = vmatpush1.msra.mxu0 0.0
    %398 = vmatprep.subr.mxu0 0.0
    %399 = vmatpush1.msra.mxu0 0.0
    %400 = vmatprep.subr.mxu0 0.0
    %401 = vmatpush1.msra.mxu0 0.0
    %402 = vmatprep.subr.mxu0 0.0
    %403 = vmatpush1.msra.mxu0 0.0
    %404 = vmatprep.subr.mxu0 0.0
    %405 = vmatpush1.msra.mxu0 0.0
    %406 = vmatprep.subr.mxu0 0.0
    %407 = vmatpush1.msra.mxu0 0.0
    %408 = vmatprep.subr.mxu0 0.0
    %409 = vmatpush1.msra.mxu0 0.0
    %410 = vmatprep.subr.mxu0 0.0
    %411 = vmatpush1.msra.mxu0 0.0
    %412 = vmatprep.subr.mxu0 0.0
    %413 = vmatpush1.msra.mxu0 0.0
    %414 = vmatprep.subr.mxu0 0.0
    %415 = vmatpush1.msra.mxu0 0.0
    %416 = vmatprep.subr.mxu0 0.0
    %417 = vmatpush1.msra.mxu0 0.0
    %418 = vmatprep.subr.mxu0 0.0
    %419 = vmatpush1.msra.mxu0 0.0
    %420 = vmatprep.subr.mxu0 0.0
    %421 = vmatpush1.msra.mxu0 0.0
    %422 = vmatprep.subr.mxu0 0.0
    %423 = vmatpush1.msra.mxu0 0.0
    %424 = vmatprep.subr.mxu0 0.0
    %425 = vmatpush1.msra.mxu0 0.0
    %426 = vmatprep.subr.mxu0 0.0
    %427 = vmatpush1.msra.mxu0 0.0
    %428 = vmatprep.subr.mxu0 0.0
    %429 = vmatpush1.msra.mxu0 0.0
    %430 = vmatprep.subr.mxu0 0.0
    %431 = vmatpush1.msra.mxu0 0.0
    %432 = vmatprep.subr.mxu0 0.0
    %433 = vmatpush1.msra.mxu0 0.0
    %434 = vmatprep.subr.mxu0 0.0
    %435 = vmatpush1.msra.mxu0 0.0
    %436 = vmatprep.subr.mxu0 0.0
    %437 = vmatpush1.msra.mxu0 0.0
    %438 = vmatprep.subr.mxu0 0.0
    %439 = vmatpush1.msra.mxu0 0.0
    %440 = vmatprep.subr.mxu0 0.0
    %441 = vmatpush1.msra.mxu0 0.0
    %442 = vmatprep.subr.mxu0 0.0
    %443 = vmatpush1.msra.mxu0 0.0
    %444 = vmatprep.subr.mxu0 0.0
    %445 = vmatpush1.msra.mxu0 0.0
    %446 = vmatprep.subr.mxu0 0.0
    %447 = vmatpush1.msra.mxu0 0.0
    %448 = vmatprep.subr.mxu0 0.0
    %449 = vmatpush1.msra.mxu0 0.0
    %450 = vmatprep.subr.mxu0 0.0
    %451 = vmatpush1.msra.mxu0 0.0
    %452 = vmatprep.mubr.f32.mxu0 0.0
    %453 = vmatmul.mubr.f32.gmra.mrb[0].mxu0 %v386
    %v454 = vpop.f32.mrb[0].mxu0
    %v455 = vadd.f32 0.0, %v454
    %v456 = vpop.f32.mrb[0].mxu0
    %457 = vdwg.mxu0
    %458 = vst [vmem:[#allocation10] sm:$0xff] %v455
    // Predicated region
    $region38: #{tpu_custom_call.1} parent=1 // pred_check
      _
    $region39: #{tpu_custom_call.1} parent=1 // pred_check_branch
      %460 = sbr.rel (0) target = $region41
    $region40: #{tpu_custom_call.1} parent=1 // pred_region
      %s462 = ssub.s32 128, 128
      %463 = vsyncadd [#allocation4], %s462
      %s465 = sshll.u32 [#allocation10], 4
      %s466 = int_to_ptr.vmem [resolvable:$true] %s465
      %468 = dma.vmem_to_hbm [thread:$0]  %s466, 128, %s5, [#allocation4]
    $region41: #{tpu_custom_call.1} parent=1 // pred_fallthru
      _
    // Predicated region
    $region42: #{tpu_custom_call.1} parent=1 // pred_check
      _
    $region43: #{tpu_custom_call.1} parent=1 // pred_check_branch
      %470 = sbr.rel (0) target = $region45
    $region44: #{tpu_custom_call.1} parent=1 // pred_region
      %471 = dma.done [#allocation4], 128
    $region45: #{tpu_custom_call.1} parent=1 // pred_fallthru
      _
    %472 = vsyncpa [#allocation3], 1
    %473 = vsyncpa [#allocation6], 1
    %474 = vsyncpa [#allocation9], 1
    %475 = vsyncpa [#allocation4], 1

</llo_original>
